<compile_context>
chip_gen: v6e
topology: v6e:2x2x1
jax: 0.10.0
libtpu: 0.0.40
codegen_flags: <defaults>
</compile_context>

<pallas_src>
import functools

import numpy as np
import jax
import jax.numpy as jnp
from jax.experimental import pallas as pl
from jax.experimental.pallas import tpu as pltpu

HIDDEN = 128
LANE = 128
LN_EPS = 1e-5
F32_MAX = float(np.finfo(np.float32).max)


def _round_up(x, m):
    return (x + m - 1) // m * m


def _bf16_elementwise_default():
    """bf16 VALU exists on v6e/v7x; keep elementwise math in f32 on v5e/v4."""
    try:
        kind = jax.devices()[0].device_kind.lower()
    except Exception:
        return False
    return ("v6" in kind) or ("v7" in kind)


def _ln_relu(h, gamma, beta, ew_dtype):
    """Single-pass LayerNorm moments in f32, affine + ReLU in ew_dtype."""
    n = h.shape[-1]
    s1 = jnp.sum(h, axis=-1, keepdims=True)
    s2 = jnp.sum(h * h, axis=-1, keepdims=True)
    mu = s1 * (1.0 / n)
    inv = jax.lax.rsqrt(s2 * (1.0 / n) - mu * mu + LN_EPS)
    h_e = h.astype(ew_dtype)
    y = (h_e - mu.astype(ew_dtype)) * inv.astype(ew_dtype)
    y = y * gamma.astype(ew_dtype) + beta.astype(ew_dtype)
    return jnp.maximum(y, 0.0)


def ppo_agent_kernel(
    x_ref,                                   # (TM, state_dim)   f32
    w1_ref, b1_ref, g1_ref, be1_ref,         # (S,128) bf16, (1,128) f32 x3
    w2_ref, b2_ref, g2_ref, be2_ref,         # (128,128) bf16, (1,128) f32 x3
    w3_ref, b3_ref,                          # (128,A_pad) bf16, (1,A_pad) f32
    mean_ref,                                # (TM, A_pad)       bf16
    *, ew_dtype,
):
    # torch.nan_to_num(state, 0.0): NaN -> 0, +/-inf -> +/-max finite f32.
    x = x_ref[...]
    x = jnp.where(jnp.isnan(x), 0.0, x)
    x = jnp.clip(x, -F32_MAX, F32_MAX)

    # fc1 -> ln1 -> relu  (bf16 MXU operands, f32 accumulation + LN moments)
    h = jnp.dot(x.astype(jnp.bfloat16), w1_ref[...],
                preferred_element_type=jnp.float32) + b1_ref[...]
    h = _ln_relu(h, g1_ref[...], be1_ref[...], ew_dtype)

    # fc2 -> ln2 -> relu
    h = jnp.dot(h.astype(jnp.bfloat16), w2_ref[...],
                preferred_element_type=jnp.float32) + b2_ref[...]
    h = _ln_relu(h, g2_ref[...], be2_ref[...], ew_dtype)

    # fc3 (lane-padded to 128 cols) -> tanh * pi -> NaN guard (tanh is always
    # finite, so only NaN handling is needed, matching torch.nan_to_num(mean)).
    logits = jnp.dot(h.astype(jnp.bfloat16), w3_ref[...],
                     preferred_element_type=jnp.float32) + b3_ref[...]
    mean = jnp.tanh(logits) * jnp.float32(np.pi)
    mean = jnp.where(jnp.isnan(mean), 0.0, mean)
    mean_ref[...] = mean.astype(mean_ref.dtype)


def ppo_agent_forward(state, params, *, block_m=2048, ew_bf16=None):
    """Pure-JAX wrapper mirroring PPOAgent.forward.

    state: [state_dim] or [B, state_dim] float32
    params: output of prepare_params() (bf16 weights, padded fc3, cached std)
    returns (mean, std): mean is [action_dim] if the input was 1-D, otherwise
    [B, action_dim]; std is [action_dim].
    """
    if ew_bf16 is None:
        ew_bf16 = _bf16_elementwise_default()
    ew_dtype = jnp.bfloat16 if ew_bf16 else jnp.float32

    squeezed = state.ndim == 1
    if squeezed:
        state = state[None, :]
    B, state_dim = state.shape
    action_dim = params["log_std"].shape[0]
    A_pad = params["w3"].shape[1]

    # Batch tiling: TM multiple of 8, capped at block_m.  For B >= 16 the tile
    # is also capped so the grid has >= 2 steps (keeps both v7x TCs busy).
    TM = min(block_m, _round_up(B, 8))
    if B >= 16:
        TM = min(TM, _round_up(-(-B // 2), 8))
    B_pad = _round_up(B, TM)

    x = state
    if B_pad != B:
        x = jnp.pad(x, ((0, B_pad - B), (0, 0)))

    grid = (B_pad // TM,)

    def _const(shape):
        # Weight/bias blocks: same block every grid step -> fetched once and
        # VMEM-resident across the batch loop.
        return pl.BlockSpec(shape, lambda i: (0, 0))

    mean_padded = pl.pallas_call(
        functools.partial(ppo_agent_kernel, ew_dtype=ew_dtype),
        out_shape=jax.ShapeDtypeStruct((B_pad, A_pad), jnp.bfloat16),
        grid=grid,
        in_specs=[
            pl.BlockSpec((TM, state_dim), lambda i: (i, 0)),
            _const((state_dim, HIDDEN)), _const((1, HIDDEN)),
            _const((1, HIDDEN)), _const((1, HIDDEN)),
            _const((HIDDEN, HIDDEN)), _const((1, HIDDEN)),
            _const((1, HIDDEN)), _const((1, HIDDEN)),
            _const((HIDDEN, A_pad)), _const((1, A_pad)),
        ],
        out_specs=pl.BlockSpec((TM, A_pad), lambda i: (i, 0)),
        compiler_params=pltpu.CompilerParams(
            dimension_semantics=("parallel",),
            vmem_limit_bytes=32 * 1024 * 1024,
        ),
    )(
        x,
        params["w1"], params["b1"], params["g1"], params["be1"],
        params["w2"], params["b2"], params["g2"], params["be2"],
        params["w3"], params["b3"],
    )

    mean = mean_padded[:B, :action_dim].astype(jnp.float32)
    if squeezed:
        mean = mean[0]                      # mimic torch .squeeze(0)

    # std depends only on log_std -> precomputed once in prepare_params().
    return mean, params["std"]


def init_raw_params(state_dim, action_dim, key):
    """f32 parameters matching PPOAgent.__init__: orthogonal(gain=0.1)
    weights, zero biases, LayerNorm gamma=1 / beta=0, log_std = -2.0."""
    k1, k2, k3 = jax.random.split(key, 3)
    ortho = jax.nn.initializers.orthogonal(scale=0.1)
    # Stored as [in, out] so the kernel computes x @ W (torch stores [out,in]).
    return {
        "w1": ortho(k1, (state_dim, HIDDEN), jnp.float32),
        "b1": jnp.zeros((1, HIDDEN), jnp.float32),
        "g1": jnp.ones((1, HIDDEN), jnp.float32),
        "be1": jnp.zeros((1, HIDDEN), jnp.float32),
        "w2": ortho(k2, (HIDDEN, HIDDEN), jnp.float32),
        "b2": jnp.zeros((1, HIDDEN), jnp.float32),
        "g2": jnp.ones((1, HIDDEN), jnp.float32),
        "be2": jnp.zeros((1, HIDDEN), jnp.float32),
        "w3": ortho(k3, (HIDDEN, action_dim), jnp.float32),
        "b3": jnp.zeros((1, action_dim), jnp.float32),
        "log_std": jnp.full((action_dim,), -2.0, jnp.float32),
    }


def prepare_params(raw):
    """One-time hoist of per-call wrapper work: bf16 weight casts, lane-padding
    of fc3 to 128 columns, and the std = clamp(exp(log_std)) chain.
    Re-run only when the raw parameters change."""
    action_dim = raw["log_std"].shape[0]
    A_pad = _round_up(action_dim, LANE)
    std = jnp.clip(jnp.exp(raw["log_std"]), 1e-4, 1.0)
    std = jnp.where(jnp.isnan(std), 1e-4, std)
    p = dict(raw)
    p["w1"] = raw["w1"].astype(jnp.bfloat16)
    p["w2"] = raw["w2"].astype(jnp.bfloat16)
    p["w3"] = jnp.pad(raw["w3"],
                      ((0, 0), (0, A_pad - action_dim))).astype(jnp.bfloat16)
    p["b3"] = jnp.pad(raw["b3"], ((0, 0), (0, A_pad - action_dim)))
    p["std"] = std
    return p


def _reference_forward(state, raw):
    """Plain-JAX f32 reference for a correctness sanity check."""
    x = jnp.where(jnp.isnan(state), 0.0, state)
    if x.ndim == 1:
        x = x[None, :]

    def ln(h, g, b):
        mu = jnp.mean(h, axis=-1, keepdims=True)
        var = jnp.mean((h - mu) ** 2, axis=-1, keepdims=True)
        return (h - mu) * jax.lax.rsqrt(var + LN_EPS) * g + b

    h = jnp.maximum(ln(x @ raw["w1"] + raw["b1"], raw["g1"], raw["be1"]), 0.0)
    h = jnp.maximum(ln(h @ raw["w2"] + raw["b2"], raw["g2"], raw["be2"]), 0.0)
    mean = jnp.tanh(h @ raw["w3"] + raw["b3"]) * np.pi
    std = jnp.clip(jnp.exp(raw["log_std"]), 1e-4, 1.0)
    if state.ndim == 1:
        mean = mean[0]
    return mean, std


if __name__ == "__main__":
    state_dim, action_dim = 32, 8
    key = jax.random.PRNGKey(0)
    pkey, skey1, skey2 = jax.random.split(key, 3)
    raw = init_raw_params(state_dim, action_dim, pkey)
    params = prepare_params(raw)            # one-time hoist, not per-forward

    fwd = jax.jit(ppo_agent_forward, static_argnames=("block_m", "ew_bf16"))

    # Small batch (B=2): single grid step, padded to TM=8 rows.
    B = 2
    state = jax.random.normal(skey1, (B, state_dim), dtype=jnp.float32)
    mean, std = fwd(state, params)
    jax.block_until_ready((mean, std))
    ref_mean, ref_std = _reference_forward(state, raw)
    assert mean.shape == (B, action_dim) and std.shape == (action_dim,)
    # bf16 matmul operands / bf16 output store -> loosened tolerance vs f32.
    np.testing.assert_allclose(np.asarray(mean), np.asarray(ref_mean),
                               rtol=5e-2, atol=2e-2)
    np.testing.assert_allclose(np.asarray(std), np.asarray(ref_std),
                               rtol=1e-6, atol=1e-6)

    # Larger batch (B=1024): exercises the >= 2-step parallel grid (TM=512,
    # both v7x TensorCores active) and the pipelined path.
    B2 = 1024
    state2 = jax.random.normal(skey2, (B2, state_dim), dtype=jnp.float32)
    mean2, _ = fwd(state2, params)
    jax.block_until_ready(mean2)
    ref_mean2, _ = _reference_forward(state2, raw)
    assert mean2.shape == (B2, action_dim)
    np.testing.assert_allclose(np.asarray(mean2), np.asarray(ref_mean2),
                               rtol=5e-2, atol=2e-2)

    # 1-D state path (torch .squeeze(0) semantics).
    mean1, std1 = fwd(state[0], params)
    jax.block_until_ready((mean1, std1))
    assert mean1.shape == (action_dim,) and std1.shape == (action_dim,)

    # TODO(synk): Python-side "Warning: NaN detected" prints from the torch
    # module are host control flow and intentionally not replicated.
    print("KERNEL_OK")
</pallas_src>

<mosaic_0001>
module attributes {stable_mosaic.version = 11 : i64} {
  func.func @ppo_agent_kernel(%arg0: i32, %arg1: memref<8x32xf32, #tpu.memory_space<vmem>>, %arg2: memref<32x128xbf16, #tpu.memory_space<vmem>>, %arg3: memref<1x128xf32, #tpu.memory_space<vmem>>, %arg4: memref<1x128xf32, #tpu.memory_space<vmem>>, %arg5: memref<1x128xf32, #tpu.memory_space<vmem>>, %arg6: memref<128x128xbf16, #tpu.memory_space<vmem>>, %arg7: memref<1x128xf32, #tpu.memory_space<vmem>>, %arg8: memref<1x128xf32, #tpu.memory_space<vmem>>, %arg9: memref<1x128xf32, #tpu.memory_space<vmem>>, %arg10: memref<128x128xbf16, #tpu.memory_space<vmem>>, %arg11: memref<1x128xf32, #tpu.memory_space<vmem>>, %arg12: memref<8x128xbf16, #tpu.memory_space<vmem>>) attributes {dimension_semantics = [#tpu.dimension_semantics<parallel>], iteration_bounds = array<i64: 1>, scalar_prefetch = 0 : i64, scratch_operands = 0 : i64, tpu.core_type = #tpu.core_type<tc>, window_params = [{transform_indices = @transform_0, window_bounds = array<i64: 8, 32>}, {pipeline_mode = #tpu.pipeline_mode<synchronous>, transform_indices = @transform_1, window_bounds = array<i64: 32, 128>}, {pipeline_mode = #tpu.pipeline_mode<synchronous>, transform_indices = @transform_2, window_bounds = array<i64: 1, 128>}, {pipeline_mode = #tpu.pipeline_mode<synchronous>, transform_indices = @transform_3, window_bounds = array<i64: 1, 128>}, {pipeline_mode = #tpu.pipeline_mode<synchronous>, transform_indices = @transform_4, window_bounds = array<i64: 1, 128>}, {pipeline_mode = #tpu.pipeline_mode<synchronous>, transform_indices = @transform_5, window_bounds = array<i64: 128, 128>}, {pipeline_mode = #tpu.pipeline_mode<synchronous>, transform_indices = @transform_6, window_bounds = array<i64: 1, 128>}, {pipeline_mode = #tpu.pipeline_mode<synchronous>, transform_indices = @transform_7, window_bounds = array<i64: 1, 128>}, {pipeline_mode = #tpu.pipeline_mode<synchronous>, transform_indices = @transform_8, window_bounds = array<i64: 1, 128>}, {pipeline_mode = #tpu.pipeline_mode<synchronous>, transform_indices = @transform_9, window_bounds = array<i64: 128, 128>}, {pipeline_mode = #tpu.pipeline_mode<synchronous>, transform_indices = @transform_10, window_bounds = array<i64: 1, 128>}, {transform_indices = @transform_11, window_bounds = array<i64: 8, 128>}]} {
    %c0 = arith.constant 0 : index
    %c0_0 = arith.constant 0 : index
    %0 = vector.load %arg1[%c0, %c0_0] : memref<8x32xf32, #tpu.memory_space<vmem>>, vector<8x32xf32>
    %1 = arith.cmpf one, %0, %0 : vector<8x32xf32>
    %cst = arith.constant 0.000000e+00 : f32
    %2 = vector.broadcast %cst : f32 to vector<8x32xf32>
    %3 = arith.select %1, %2, %0 : vector<8x32xi1>, vector<8x32xf32>
    %cst_1 = arith.constant -3.40282347E+38 : f32
    %cst_2 = arith.constant 3.40282347E+38 : f32
    %4 = vector.broadcast %cst_1 : f32 to vector<8x32xf32>
    %5 = arith.maximumf %4, %3 : vector<8x32xf32>
    %6 = vector.broadcast %cst_2 : f32 to vector<8x32xf32>
    %7 = arith.minimumf %6, %5 : vector<8x32xf32>
    %8 = arith.truncf %7 : vector<8x32xf32> to vector<8x32xbf16>
    %c0_3 = arith.constant 0 : index
    %c0_4 = arith.constant 0 : index
    %9 = vector.load %arg2[%c0_3, %c0_4] : memref<32x128xbf16, #tpu.memory_space<vmem>>, vector<32x128xbf16>
    %cst_5 = arith.constant dense<0.000000e+00> : vector<8x128xf32>
    %10 = tpu.matmul %8, %9, %cst_5 {dimension_numbers = #tpu.dot_dimension_numbers<[1], [0], [0], [1], [0, 0, 1, 1], [], []>} : vector<8x32xbf16>, vector<32x128xbf16>, vector<8x128xf32> -> vector<8x128xf32>
    %c0_6 = arith.constant 0 : index
    %c0_7 = arith.constant 0 : index
    %11 = vector.load %arg3[%c0_6, %c0_7] : memref<1x128xf32, #tpu.memory_space<vmem>>, vector<1x128xf32>
    %12 = vector.broadcast %11 : vector<1x128xf32> to vector<8x128xf32>
    %13 = arith.addf %10, %12 : vector<8x128xf32>
    %c0_8 = arith.constant 0 : index
    %c0_9 = arith.constant 0 : index
    %14 = vector.load %arg4[%c0_8, %c0_9] : memref<1x128xf32, #tpu.memory_space<vmem>>, vector<1x128xf32>
    %c0_10 = arith.constant 0 : index
    %c0_11 = arith.constant 0 : index
    %15 = vector.load %arg5[%c0_10, %c0_11] : memref<1x128xf32, #tpu.memory_space<vmem>>, vector<1x128xf32>
    %cst_12 = arith.constant dense<0.000000e+00> : vector<8xf32>
    %16 = vector.multi_reduction <add>, %13, %cst_12 [1] : vector<8x128xf32> to vector<8xf32>
    %17 = vector.shape_cast %16 : vector<8xf32> to vector<8x1xf32>
    %18 = arith.mulf %13, %13 : vector<8x128xf32>
    %cst_13 = arith.constant dense<0.000000e+00> : vector<8xf32>
    %19 = vector.multi_reduction <add>, %18, %cst_13 [1] : vector<8x128xf32> to vector<8xf32>
    %20 = vector.shape_cast %19 : vector<8xf32> to vector<8x1xf32>
    %cst_14 = arith.constant 7.812500e-03 : f32
    %21 = vector.broadcast %cst_14 : f32 to vector<8x1xf32>
    %22 = arith.mulf %17, %21 : vector<8x1xf32>
    %cst_15 = arith.constant 7.812500e-03 : f32
    %23 = vector.broadcast %cst_15 : f32 to vector<8x1xf32>
    %24 = arith.mulf %20, %23 : vector<8x1xf32>
    %25 = arith.mulf %22, %22 : vector<8x1xf32>
    %26 = arith.subf %24, %25 : vector<8x1xf32>
    %cst_16 = arith.constant 9.99999974E-6 : f32
    %27 = vector.broadcast %cst_16 : f32 to vector<8x1xf32>
    %28 = arith.addf %26, %27 : vector<8x1xf32>
    %29 = math.rsqrt %28 : vector<8x1xf32>
    %30 = vector.broadcast %22 : vector<8x1xf32> to vector<8x128xf32>
    %31 = arith.subf %13, %30 : vector<8x128xf32>
    %32 = vector.broadcast %29 : vector<8x1xf32> to vector<8x128xf32>
    %33 = arith.mulf %31, %32 : vector<8x128xf32>
    %34 = vector.broadcast %14 : vector<1x128xf32> to vector<8x128xf32>
    %35 = arith.mulf %33, %34 : vector<8x128xf32>
    %36 = vector.broadcast %15 : vector<1x128xf32> to vector<8x128xf32>
    %37 = arith.addf %35, %36 : vector<8x128xf32>
    %cst_17 = arith.constant 0.000000e+00 : f32
    %38 = vector.broadcast %cst_17 : f32 to vector<8x128xf32>
    %39 = arith.maximumf %37, %38 : vector<8x128xf32>
    %40 = arith.truncf %39 : vector<8x128xf32> to vector<8x128xbf16>
    %c0_18 = arith.constant 0 : index
    %c0_19 = arith.constant 0 : index
    %41 = vector.load %arg6[%c0_18, %c0_19] : memref<128x128xbf16, #tpu.memory_space<vmem>>, vector<128x128xbf16>
    %cst_20 = arith.constant dense<0.000000e+00> : vector<8x128xf32>
    %42 = tpu.matmul %40, %41, %cst_20 {dimension_numbers = #tpu.dot_dimension_numbers<[1], [0], [0], [1], [0, 0, 1, 1], [], []>} : vector<8x128xbf16>, vector<128x128xbf16>, vector<8x128xf32> -> vector<8x128xf32>
    %c0_21 = arith.constant 0 : index
    %c0_22 = arith.constant 0 : index
    %43 = vector.load %arg7[%c0_21, %c0_22] : memref<1x128xf32, #tpu.memory_space<vmem>>, vector<1x128xf32>
    %44 = vector.broadcast %43 : vector<1x128xf32> to vector<8x128xf32>
    %45 = arith.addf %42, %44 : vector<8x128xf32>
    %c0_23 = arith.constant 0 : index
    %c0_24 = arith.constant 0 : index
    %46 = vector.load %arg8[%c0_23, %c0_24] : memref<1x128xf32, #tpu.memory_space<vmem>>, vector<1x128xf32>
    %c0_25 = arith.constant 0 : index
    %c0_26 = arith.constant 0 : index
    %47 = vector.load %arg9[%c0_25, %c0_26] : memref<1x128xf32, #tpu.memory_space<vmem>>, vector<1x128xf32>
    %cst_27 = arith.constant dense<0.000000e+00> : vector<8xf32>
    %48 = vector.multi_reduction <add>, %45, %cst_27 [1] : vector<8x128xf32> to vector<8xf32>
    %49 = vector.shape_cast %48 : vector<8xf32> to vector<8x1xf32>
    %50 = arith.mulf %45, %45 : vector<8x128xf32>
    %cst_28 = arith.constant dense<0.000000e+00> : vector<8xf32>
    %51 = vector.multi_reduction <add>, %50, %cst_28 [1] : vector<8x128xf32> to vector<8xf32>
    %52 = vector.shape_cast %51 : vector<8xf32> to vector<8x1xf32>
    %cst_29 = arith.constant 7.812500e-03 : f32
    %53 = vector.broadcast %cst_29 : f32 to vector<8x1xf32>
    %54 = arith.mulf %49, %53 : vector<8x1xf32>
    %cst_30 = arith.constant 7.812500e-03 : f32
    %55 = vector.broadcast %cst_30 : f32 to vector<8x1xf32>
    %56 = arith.mulf %52, %55 : vector<8x1xf32>
    %57 = arith.mulf %54, %54 : vector<8x1xf32>
    %58 = arith.subf %56, %57 : vector<8x1xf32>
    %cst_31 = arith.constant 9.99999974E-6 : f32
    %59 = vector.broadcast %cst_31 : f32 to vector<8x1xf32>
    %60 = arith.addf %58, %59 : vector<8x1xf32>
    %61 = math.rsqrt %60 : vector<8x1xf32>
    %62 = vector.broadcast %54 : vector<8x1xf32> to vector<8x128xf32>
    %63 = arith.subf %45, %62 : vector<8x128xf32>
    %64 = vector.broadcast %61 : vector<8x1xf32> to vector<8x128xf32>
    %65 = arith.mulf %63, %64 : vector<8x128xf32>
    %66 = vector.broadcast %46 : vector<1x128xf32> to vector<8x128xf32>
    %67 = arith.mulf %65, %66 : vector<8x128xf32>
    %68 = vector.broadcast %47 : vector<1x128xf32> to vector<8x128xf32>
    %69 = arith.addf %67, %68 : vector<8x128xf32>
    %cst_32 = arith.constant 0.000000e+00 : f32
    %70 = vector.broadcast %cst_32 : f32 to vector<8x128xf32>
    %71 = arith.maximumf %69, %70 : vector<8x128xf32>
    %72 = arith.truncf %71 : vector<8x128xf32> to vector<8x128xbf16>
    %c0_33 = arith.constant 0 : index
    %c0_34 = arith.constant 0 : index
    %73 = vector.load %arg10[%c0_33, %c0_34] : memref<128x128xbf16, #tpu.memory_space<vmem>>, vector<128x128xbf16>
    %cst_35 = arith.constant dense<0.000000e+00> : vector<8x128xf32>
    %74 = tpu.matmul %72, %73, %cst_35 {dimension_numbers = #tpu.dot_dimension_numbers<[1], [0], [0], [1], [0, 0, 1, 1], [], []>} : vector<8x128xbf16>, vector<128x128xbf16>, vector<8x128xf32> -> vector<8x128xf32>
    %c0_36 = arith.constant 0 : index
    %c0_37 = arith.constant 0 : index
    %75 = vector.load %arg11[%c0_36, %c0_37] : memref<1x128xf32, #tpu.memory_space<vmem>>, vector<1x128xf32>
    %76 = vector.broadcast %75 : vector<1x128xf32> to vector<8x128xf32>
    %77 = arith.addf %74, %76 : vector<8x128xf32>
    %78 = math.tanh %77 : vector<8x128xf32>
    %cst_38 = arith.constant 3.14159274 : f32
    %79 = vector.broadcast %cst_38 : f32 to vector<8x128xf32>
    %80 = arith.mulf %78, %79 : vector<8x128xf32>
    %81 = arith.cmpf one, %80, %80 : vector<8x128xf32>
    %cst_39 = arith.constant 0.000000e+00 : f32
    %82 = vector.broadcast %cst_39 : f32 to vector<8x128xf32>
    %83 = arith.select %81, %82, %80 : vector<8x128xi1>, vector<8x128xf32>
    %84 = arith.truncf %83 : vector<8x128xf32> to vector<8x128xbf16>
    %c0_40 = arith.constant 0 : index
    %c0_41 = arith.constant 0 : index
    %85 = vector.load %arg12[%c0_40, %c0_41] : memref<8x128xbf16, #tpu.memory_space<vmem>>, vector<8x128xbf16>
    tpu.vector_store %arg12[%c0_40, %c0_41], %84 {strides = array<i32>} : memref<8x128xbf16, #tpu.memory_space<vmem>>, vector<8x128xbf16>,
    return
  }
  func.func @transform_0(%arg0: i32) -> (i32, i32) {
    %c0_i32 = arith.constant 0 : i32
    %c0_i32_0 = arith.constant 0 : i32
    return %arg0, %c0_i32 : i32, i32
  }
  func.func @transform_1(%arg0: i32) -> (i32, i32) {
    %c0_i32 = arith.constant 0 : i32
    %c0_i32_0 = arith.constant 0 : i32
    %c0_i32_1 = arith.constant 0 : i32
    return %c0_i32, %c0_i32_0 : i32, i32
  }
  func.func @transform_2(%arg0: i32) -> (i32, i32) {
    %c0_i32 = arith.constant 0 : i32
    %c0_i32_0 = arith.constant 0 : i32
    %c0_i32_1 = arith.constant 0 : i32
    return %c0_i32, %c0_i32_0 : i32, i32
  }
  func.func @transform_3(%arg0: i32) -> (i32, i32) {
    %c0_i32 = arith.constant 0 : i32
    %c0_i32_0 = arith.constant 0 : i32
    %c0_i32_1 = arith.constant 0 : i32
    return %c0_i32, %c0_i32_0 : i32, i32
  }
  func.func @transform_4(%arg0: i32) -> (i32, i32) {
    %c0_i32 = arith.constant 0 : i32
    %c0_i32_0 = arith.constant 0 : i32
    %c0_i32_1 = arith.constant 0 : i32
    return %c0_i32, %c0_i32_0 : i32, i32
  }
  func.func @transform_5(%arg0: i32) -> (i32, i32) {
    %c0_i32 = arith.constant 0 : i32
    %c0_i32_0 = arith.constant 0 : i32
    %c0_i32_1 = arith.constant 0 : i32
    return %c0_i32, %c0_i32_0 : i32, i32
  }
  func.func @transform_6(%arg0: i32) -> (i32, i32) {
    %c0_i32 = arith.constant 0 : i32
    %c0_i32_0 = arith.constant 0 : i32
    %c0_i32_1 = arith.constant 0 : i32
    return %c0_i32, %c0_i32_0 : i32, i32
  }
  func.func @transform_7(%arg0: i32) -> (i32, i32) {
    %c0_i32 = arith.constant 0 : i32
    %c0_i32_0 = arith.constant 0 : i32
    %c0_i32_1 = arith.constant 0 : i32
    return %c0_i32, %c0_i32_0 : i32, i32
  }
  func.func @transform_8(%arg0: i32) -> (i32, i32) {
    %c0_i32 = arith.constant 0 : i32
    %c0_i32_0 = arith.constant 0 : i32
    %c0_i32_1 = arith.constant 0 : i32
    return %c0_i32, %c0_i32_0 : i32, i32
  }
  func.func @transform_9(%arg0: i32) -> (i32, i32) {
    %c0_i32 = arith.constant 0 : i32
    %c0_i32_0 = arith.constant 0 : i32
    %c0_i32_1 = arith.constant 0 : i32
    return %c0_i32, %c0_i32_0 : i32, i32
  }
  func.func @transform_10(%arg0: i32) -> (i32, i32) {
    %c0_i32 = arith.constant 0 : i32
    %c0_i32_0 = arith.constant 0 : i32
    %c0_i32_1 = arith.constant 0 : i32
    return %c0_i32, %c0_i32_0 : i32, i32
  }
  func.func @transform_11(%arg0: i32) -> (i32, i32) {
    %c0_i32 = arith.constant 0 : i32
    %c0_i32_0 = arith.constant 0 : i32
    return %arg0, %c0_i32 : i32, i32
  }
}

</mosaic_0001>

<llo_original>
// kernel: ppo_agent_forward.1
$region0: #{ppo_agent_forward.1}
  #allocation0 [shape = 'u32[]', space=smem, size = 0x4, offset = 0x4, fixed_abs, tag = 'smem constant byte address 0x4 - core index']
  #allocation1 [shape = 'u32[144,128]{1,0:T(1,128)}', space=vmem, size = 0x12000, scoped, tag = 'internal scratch']
  %s0 = inlined_call_operand.vmem [shape: f32[8,32], index: 0, kind: input, shape index: {}]
  %s1 = inlined_call_operand.vmem [shape: bf16[32,128], index: 1, kind: input, shape index: {}]
  %s2 = inlined_call_operand.vmem [shape: f32[1,128], index: 2, kind: input, shape index: {}]
  %s3 = inlined_call_operand.vmem [shape: f32[1,128], index: 3, kind: input, shape index: {}]
  %s4 = inlined_call_operand.vmem [shape: f32[1,128], index: 4, kind: input, shape index: {}]
  %s5 = inlined_call_operand.hbm [shape: bf16[128,128], index: 5, kind: input, shape index: {}]
  %s6 = inlined_call_operand.vmem [shape: f32[1,128], index: 6, kind: input, shape index: {}]
  %s7 = inlined_call_operand.hbm [shape: f32[1,128], index: 7, kind: input, shape index: {}]
  %s8 = inlined_call_operand.hbm [shape: f32[1,128], index: 8, kind: input, shape index: {}]
  %s9 = inlined_call_operand.hbm [shape: bf16[128,128], index: 9, kind: input, shape index: {}]
  %s10 = inlined_call_operand.vmem [shape: f32[1,128], index: 10, kind: input, shape index: {}]
  %s11 = inlined_call_operand.vmem [shape: bf16[8,128], index: 11, kind: output, shape index: {}]
  %s12 = sld [smem:[#allocation0]]
  $region70: #{ppo_agent_forward.1} parent=0
    _
  %s14 = ssub.s32 1, %s12
  %s15 = scalar_select 0, %s14, %s12
  $region1: #{ppo_agent_forward.1} parent=0
    #allocation2 [shape = 'u8[32768]{0}', space=vmem, size = 0x8000, scoped, tag = 'input window, operand 5, single buffered']
    #allocation3 [shape = 's32[1]{0}', space=sflag, size = 0x4, scoped, tag = 'scoped memory for ppo_agent_forward.1']
    #allocation4 [shape = 'u8[512]{0}', space=vmem, size = 0x400, scoped, tag = 'input window, operand 7, single buffered']
    #allocation5 [shape = 's32[1]{0}', space=sflag, size = 0x4, scoped, tag = 'scoped memory for ppo_agent_forward.1']
    #allocation6 [shape = 'u8[512]{0}', space=vmem, size = 0x400, scoped, tag = 'input window, operand 8, single buffered']
    #allocation7 [shape = 'u8[32768]{0}', space=vmem, size = 0x8000, scoped, tag = 'input window, operand 9, single buffered']
    #allocation8 [shape = 's32[1]{0}', space=sflag, size = 0x4, scoped, tag = 'scoped memory for ppo_agent_forward.1']
    %16 = vsyncpa [#allocation3], 0
    %17 = vsyncpa [#allocation5], 0
    %18 = vsyncpa [#allocation8], 0
    // Predicated region
    $region2: #{ppo_agent_forward.1} parent=1 // pred_check
      _
    $region3: #{ppo_agent_forward.1} parent=1 // pred_check_branch
      %20 = sbr.rel (0) target = $region5
    $region4: #{ppo_agent_forward.1} parent=1 // pred_region
      _
    $region5: #{ppo_agent_forward.1} parent=1 // pred_fallthru
      _
    // Predicated region
    $region6: #{ppo_agent_forward.1} parent=1 // pred_check
      _
    $region7: #{ppo_agent_forward.1} parent=1 // pred_check_branch
      %22 = sbr.rel (0) target = $region9
    $region8: #{ppo_agent_forward.1} parent=1 // pred_region
      _
    $region9: #{ppo_agent_forward.1} parent=1 // pred_fallthru
      _
    // Predicated region
    $region10: #{ppo_agent_forward.1} parent=1 // pred_check
      _
    $region11: #{ppo_agent_forward.1} parent=1 // pred_check_branch
      %24 = sbr.rel (0) target = $region13
    $region12: #{ppo_agent_forward.1} parent=1 // pred_region
      _
    $region13: #{ppo_agent_forward.1} parent=1 // pred_fallthru
      _
    // Predicated region
    $region14: #{ppo_agent_forward.1} parent=1 // pred_check
      _
    $region15: #{ppo_agent_forward.1} parent=1 // pred_check_branch
      %26 = sbr.rel (0) target = $region17
    $region16: #{ppo_agent_forward.1} parent=1 // pred_region
      _
    $region17: #{ppo_agent_forward.1} parent=1 // pred_fallthru
      _
    // Predicated region
    $region18: #{ppo_agent_forward.1} parent=1 // pred_check
      _
    $region19: #{ppo_agent_forward.1} parent=1 // pred_check_branch
      %28 = sbr.rel (0) target = $region21
    $region20: #{ppo_agent_forward.1} parent=1 // pred_region
      _
    $region21: #{ppo_agent_forward.1} parent=1 // pred_fallthru
      _
    // Predicated region
    $region22: #{ppo_agent_forward.1} parent=1 // pred_check
      _
    $region23: #{ppo_agent_forward.1} parent=1 // pred_check_branch
      %30 = sbr.rel (0) target = $region25
    $region24: #{ppo_agent_forward.1} parent=1 // pred_region
      %s32 = ssub.s32 1024, 1024
      %33 = vsyncadd [#allocation3], %s32
      %s34 = sshll.u32 [#allocation2], 4
      %s35 = int_to_ptr.vmem [resolvable:$true] %s34
      %40 = dma.hbm_to_vmem [thread:$0]  %s5, 1024, %s35, [#allocation3], 64, 64, 4
    $region25: #{ppo_agent_forward.1} parent=1 // pred_fallthru
      _
    // Predicated region
    $region26: #{ppo_agent_forward.1} parent=1 // pred_check
      _
    $region27: #{ppo_agent_forward.1} parent=1 // pred_check_branch
      %42 = sbr.rel (0) target = $region29
    $region28: #{ppo_agent_forward.1} parent=1 // pred_region
      _
    $region29: #{ppo_agent_forward.1} parent=1 // pred_fallthru
      _
    // Predicated region
    $region30: #{ppo_agent_forward.1} parent=1 // pred_check
      _
    $region31: #{ppo_agent_forward.1} parent=1 // pred_check_branch
      %44 = sbr.rel (0) target = $region33
    $region32: #{ppo_agent_forward.1} parent=1 // pred_region
      %s46 = ssub.s32 16, 16
      %47 = vsyncadd [#allocation5], %s46
      %s49 = sshll.u32 [#allocation4], 4
      %s50 = int_to_ptr.vmem [resolvable:$true] %s49
      %52 = dma.hbm_to_vmem [thread:$0]  %s7, 16, %s50, [#allocation5]
    $region33: #{ppo_agent_forward.1} parent=1 // pred_fallthru
      _
    // Predicated region
    $region34: #{ppo_agent_forward.1} parent=1 // pred_check
      _
    $region35: #{ppo_agent_forward.1} parent=1 // pred_check_branch
      %54 = sbr.rel (0) target = $region37
    $region36: #{ppo_agent_forward.1} parent=1 // pred_region
      %s56 = ssub.s32 16, 16
      %57 = vsyncadd [#allocation5], %s56
      %s59 = sshll.u32 [#allocation6], 4
      %s60 = int_to_ptr.vmem [resolvable:$true] %s59
      %62 = dma.hbm_to_vmem [thread:$0]  %s8, 16, %s60, [#allocation5]
    $region37: #{ppo_agent_forward.1} parent=1 // pred_fallthru
      _
    // Predicated region
    $region38: #{ppo_agent_forward.1} parent=1 // pred_check
      _
    $region39: #{ppo_agent_forward.1} parent=1 // pred_check_branch
      %64 = sbr.rel (0) target = $region41
    $region40: #{ppo_agent_forward.1} parent=1 // pred_region
      %s66 = ssub.s32 1024, 1024
      %67 = vsyncadd [#allocation8], %s66
      %s68 = sshll.u32 [#allocation7], 4
      %s69 = int_to_ptr.vmem [resolvable:$true] %s68
      %74 = dma.hbm_to_vmem [thread:$0]  %s9, 1024, %s69, [#allocation8], 64, 64, 4
    $region41: #{ppo_agent_forward.1} parent=1 // pred_fallthru
      _
    // Predicated region
    $region42: #{ppo_agent_forward.1} parent=1 // pred_check
      _
    $region43: #{ppo_agent_forward.1} parent=1 // pred_check_branch
      %76 = sbr.rel (0) target = $region45
    $region44: #{ppo_agent_forward.1} parent=1 // pred_region
      _
    $region45: #{ppo_agent_forward.1} parent=1 // pred_fallthru
      _
    // Predicated region
    $region46: #{ppo_agent_forward.1} parent=1 // pred_check
      _
    $region47: #{ppo_agent_forward.1} parent=1 // pred_check_branch
      %78 = sbr.rel (0) target = $region49
    $region48: #{ppo_agent_forward.1} parent=1 // pred_region
      %79 = dma.done [#allocation3], 1024
    $region49: #{ppo_agent_forward.1} parent=1 // pred_fallthru
      _
    // Predicated region
    $region50: #{ppo_agent_forward.1} parent=1 // pred_check
      _
    $region51: #{ppo_agent_forward.1} parent=1 // pred_check_branch
      %81 = sbr.rel (0) target = $region53
    $region52: #{ppo_agent_forward.1} parent=1 // pred_region
      %82 = dma.done [#allocation5], 16
    $region53: #{ppo_agent_forward.1} parent=1 // pred_fallthru
      _
    // Predicated region
    $region54: #{ppo_agent_forward.1} parent=1 // pred_check
      _
    $region55: #{ppo_agent_forward.1} parent=1 // pred_check_branch
      %84 = sbr.rel (0) target = $region57
    $region56: #{ppo_agent_forward.1} parent=1 // pred_region
      %85 = dma.done [#allocation5], 16
    $region57: #{ppo_agent_forward.1} parent=1 // pred_fallthru
      _
    // Predicated region
    $region58: #{ppo_agent_forward.1} parent=1 // pred_check
      _
    $region59: #{ppo_agent_forward.1} parent=1 // pred_check_branch
      %87 = sbr.rel (0) target = $region61
    $region60: #{ppo_agent_forward.1} parent=1 // pred_region
      %88 = dma.done [#allocation8], 1024
    $region61: #{ppo_agent_forward.1} parent=1 // pred_fallthru
      _
    %v90 = vld [vmem:[%s0] sm:$0xff]
    %vm91 = vcmp.ne.f32.partialorder %v90, %v90
    %v92 = vsel %vm91, 0.0, %v90
    %v93 = vmax.f32 %v92, -3.4028235e+38
    %v94 = vmin.f32 %v93, 3.4028235e+38
    %v95 = vpack.c.bf16 %v94, %v94
    %v96 = vld [vmem:[%s1] sm:$0xf]
    %v97 = vld [vmem:[%s1 + $0x4] sm:$0xf]
    %v98 = vld [vmem:[%s1 + $0x8] sm:$0xf]
    %v99 = vld [vmem:[%s1 + $0xc] sm:$0xf]
    %v100 = vld [vmem:[%s2] sm:$0x1]
    %v102 = vlaneseq
    %v103 = vshrl.u32 %v102, 7
    %v104 = vsub.s32 0, %v103
    %v105 = vrot.slane %v100, %v104
    %v111 = vunpack.c.l.b16 %v96
    %v112 = vunpack.c.l.b16 %v97
    %v113 = vunpack.c.l.b16 %v98
    %v114 = vunpack.c.l.b16 %v99
    %v115 = vpack.c.b16 %v112, %v111
    %v116 = vpack.c.b16 %v114, %v113
    %vm119 = vcmask 261120
    %v121 = vsel %vm119, %v95, 0
    %123 = vmatprep.subr.bf16.mxu0 0
    %124 = vmatpush1.bf16.msra.mxu0 0
    %125 = vmatprep.subr.bf16.mxu0 0
    %126 = vmatpush1.bf16.msra.mxu0 0
    %127 = vmatprep.subr.bf16.mxu0 0
    %128 = vmatpush1.bf16.msra.mxu0 0
    %129 = vmatprep.subr.bf16.mxu0 0
    %130 = vmatpush1.bf16.msra.mxu0 0
    %131 = vmatprep.subr.bf16.mxu0 0
    %132 = vmatpush1.bf16.msra.mxu0 0
    %133 = vmatprep.subr.bf16.mxu0 0
    %134 = vmatpush1.bf16.msra.mxu0 0
    %135 = vmatprep.subr.bf16.mxu0 0
    %136 = vmatpush1.bf16.msra.mxu0 %v116
    %137 = vmatprep.subr.bf16.mxu0 0
    %138 = vmatpush1.bf16.msra.mxu0 %v115
    %139 = vmatprep.subr.bf16.mxu0 0
    %140 = vmatpush2.bf16.msra.mxu0 0
    %141 = vmatprep.subr.bf16.mxu0 0
    %142 = vmatpush2.bf16.msra.mxu0 0
    %143 = vmatprep.subr.bf16.mxu0 0
    %144 = vmatpush2.bf16.msra.mxu0 0
    %145 = vmatprep.subr.bf16.mxu0 0
    %146 = vmatpush2.bf16.msra.mxu0 0
    %147 = vmatprep.subr.bf16.mxu0 0
    %148 = vmatpush2.bf16.msra.mxu0 0
    %149 = vmatprep.subr.bf16.mxu0 0
    %150 = vmatpush2.bf16.msra.mxu0 0
    %151 = vmatprep.subr.bf16.mxu0 0
    %152 = vmatpush2.bf16.msra.mxu0 0
    %153 = vmatprep.subr.bf16.mxu0 0
    %154 = vmatpush2.bf16.msra.mxu0 0
    %155 = vmatprep.mubr.bf16.mxu0 0
    %156 = vmatmul.mubr.bf16.gmra.mxu0 %v121
    %v157 = vpop.f32.mrf.mxu0
    %v158 = vadd.f32 %v105, %v157
    %v159 = vpop.f32.mrf.mxu0
    %v160 = vpop.f32.mrf.mxu0
    %v161 = vpop.f32.mrf.mxu0
    %162 = vdwg.mxu0
    %v163 = vld [vmem:[%s3] sm:$0x1]
    %v164 = vld [vmem:[%s4] sm:$0x1]
    %165 = vadd.xlane.f32.xlu0 %v158
    %v166 = vpop.xlane.xlu0 %165
    %v167 = vmul.f32 %v158, %v158
    %168 = vadd.xlane.f32.xlu0 %v167
    %v169 = vpop.xlane.xlu0 %168
    %v170 = vmul.f32 %v166, 0.0078125
    %v171 = vmul.f32 %v169, 0.0078125
    %v172 = vmul.f32 %v170, %v170
    %v173 = vsub.f32 %v171, %v172
    %v174 = vadd.f32 %v173, 1e-05
    %v175 = vrsqrt.pop %v174
    %v176 = vsub.f32 %v158, %v170
    %v177 = vmul.f32 %v176, %v175
    %v179 = vlaneseq
    %v180 = vshrl.u32 %v179, 7
    %v181 = vsub.s32 0, %v180
    %v182 = vrot.slane %v163, %v181
    %v184 = vmul.f32 %v177, %v182
    %v186 = vlaneseq
    %v187 = vshrl.u32 %v186, 7
    %v188 = vsub.s32 0, %v187
    %v189 = vrot.slane %v164, %v188
    %v191 = vadd.f32 %v184, %v189
    %v192 = vmax.f32 %v191, 0.0
    %v193 = vpack.c.bf16 %v192, %v192
    %v194 = vld [vmem:[#allocation2] sm:$0xf]
    %v195 = vld [vmem:[#allocation2 + $0x4] sm:$0xf]
    %v196 = vld [vmem:[#allocation2 + $0x8] sm:$0xf]
    %v197 = vld [vmem:[#allocation2 + $0xc] sm:$0xf]
    %v198 = vld [vmem:[#allocation2 + $0x10] sm:$0xf]
    %v199 = vld [vmem:[#allocation2 + $0x14] sm:$0xf]
    %v200 = vld [vmem:[#allocation2 + $0x18] sm:$0xf]
    %v201 = vld [vmem:[#allocation2 + $0x1c] sm:$0xf]
    %v202 = vld [vmem:[#allocation2 + $0x20] sm:$0xf]
    %v203 = vld [vmem:[#allocation2 + $0x24] sm:$0xf]
    %v204 = vld [vmem:[#allocation2 + $0x28] sm:$0xf]
    %v205 = vld [vmem:[#allocation2 + $0x2c] sm:$0xf]
    %v206 = vld [vmem:[#allocation2 + $0x30] sm:$0xf]
    %v207 = vld [vmem:[#allocation2 + $0x34] sm:$0xf]
    %v208 = vld [vmem:[#allocation2 + $0x38] sm:$0xf]
    %v209 = vld [vmem:[#allocation2 + $0x3c] sm:$0xf]
    %v210 = vld [vmem:[%s6] sm:$0x1]
    %v212 = vlaneseq
    %v213 = vshrl.u32 %v212, 7
    %v214 = vsub.s32 0, %v213
    %v215 = vrot.slane %v210, %v214
    %v233 = vunpack.c.l.b16 %v194
    %v234 = vunpack.c.l.b16 %v195
    %v235 = vunpack.c.l.b16 %v196
    %v236 = vunpack.c.l.b16 %v197
    %v237 = vunpack.c.l.b16 %v198
    %v238 = vunpack.c.l.b16 %v199
    %v239 = vunpack.c.l.b16 %v200
    %v240 = vunpack.c.l.b16 %v201
    %v241 = vunpack.c.l.b16 %v202
    %v242 = vunpack.c.l.b16 %v203
    %v243 = vunpack.c.l.b16 %v204
    %v244 = vunpack.c.l.b16 %v205
    %v245 = vunpack.c.l.b16 %v206
    %v246 = vunpack.c.l.b16 %v207
    %v247 = vunpack.c.l.b16 %v208
    %v248 = vunpack.c.l.b16 %v209
    %v249 = vpack.c.b16 %v234, %v233
    %v250 = vpack.c.b16 %v236, %v235
    %v251 = vpack.c.b16 %v238, %v237
    %v252 = vpack.c.b16 %v240, %v239
    %v253 = vpack.c.b16 %v242, %v241
    %v254 = vpack.c.b16 %v244, %v243
    %v255 = vpack.c.b16 %v246, %v245
    %v256 = vpack.c.b16 %v248, %v247
    %265 = vmatprep.subr.bf16.mxu0 0
    %266 = vmatpush1.bf16.msra.mxu0 %v256
    %267 = vmatprep.subr.bf16.mxu0 0
    %268 = vmatpush1.bf16.msra.mxu0 %v255
    %269 = vmatprep.subr.bf16.mxu0 0
    %270 = vmatpush1.bf16.msra.mxu0 %v254
    %271 = vmatprep.subr.bf16.mxu0 0
    %272 = vmatpush1.bf16.msra.mxu0 %v253
    %273 = vmatprep.subr.bf16.mxu0 0
    %274 = vmatpush1.bf16.msra.mxu0 %v252
    %275 = vmatprep.subr.bf16.mxu0 0
    %276 = vmatpush1.bf16.msra.mxu0 %v251
    %277 = vmatprep.subr.bf16.mxu0 0
    %278 = vmatpush1.bf16.msra.mxu0 %v250
    %279 = vmatprep.subr.bf16.mxu0 0
    %280 = vmatpush1.bf16.msra.mxu0 %v249
    %281 = vmatprep.subr.bf16.mxu0 0
    %282 = vmatpush2.bf16.msra.mxu0 0
    %283 = vmatprep.subr.bf16.mxu0 0
    %284 = vmatpush2.bf16.msra.mxu0 0
    %285 = vmatprep.subr.bf16.mxu0 0
    %286 = vmatpush2.bf16.msra.mxu0 0
    %287 = vmatprep.subr.bf16.mxu0 0
    %288 = vmatpush2.bf16.msra.mxu0 0
    %289 = vmatprep.subr.bf16.mxu0 0
    %290 = vmatpush2.bf16.msra.mxu0 0
    %291 = vmatprep.subr.bf16.mxu0 0
    %292 = vmatpush2.bf16.msra.mxu0 0
    %293 = vmatprep.subr.bf16.mxu0 0
    %294 = vmatpush2.bf16.msra.mxu0 0
    %295 = vmatprep.subr.bf16.mxu0 0
    %296 = vmatpush2.bf16.msra.mxu0 0
    %297 = vmatprep.mubr.bf16.mxu0 0
    %298 = vmatmul.mubr.bf16.gmra.mxu0 %v193
    %v299 = vpop.f32.mrf.mxu0
    %v300 = vadd.f32 %v215, %v299
    %v301 = vpop.f32.mrf.mxu0
    %v302 = vpop.f32.mrf.mxu0
    %v303 = vpop.f32.mrf.mxu0
    %304 = vdwg.mxu0
    %v305 = vld [vmem:[#allocation4] sm:$0x1]
    %v306 = vld [vmem:[#allocation6] sm:$0x1]
    %307 = vadd.xlane.f32.xlu0 %v300
    %v308 = vpop.xlane.xlu0 %307
    %v309 = vmul.f32 %v300, %v300
    %310 = vadd.xlane.f32.xlu0 %v309
    %v311 = vpop.xlane.xlu0 %310
    %v312 = vmul.f32 %v308, 0.0078125
    %v313 = vmul.f32 %v311, 0.0078125
    %v314 = vmul.f32 %v312, %v312
    %v315 = vsub.f32 %v313, %v314
    %v316 = vadd.f32 %v315, 1e-05
    %v317 = vrsqrt.pop %v316
    %v318 = vsub.f32 %v300, %v312
    %v319 = vmul.f32 %v318, %v317
    %v321 = vlaneseq
    %v322 = vshrl.u32 %v321, 7
    %v323 = vsub.s32 0, %v322
    %v324 = vrot.slane %v305, %v323
    %v326 = vmul.f32 %v319, %v324
    %v328 = vlaneseq
    %v329 = vshrl.u32 %v328, 7
    %v330 = vsub.s32 0, %v329
    %v331 = vrot.slane %v306, %v330
    %v333 = vadd.f32 %v326, %v331
    %v334 = vmax.f32 %v333, 0.0
    %v335 = vpack.c.bf16 %v334, %v334
    %v336 = vld [vmem:[#allocation7] sm:$0xf]
    %v337 = vld [vmem:[#allocation7 + $0x4] sm:$0xf]
    %v338 = vld [vmem:[#allocation7 + $0x8] sm:$0xf]
    %v339 = vld [vmem:[#allocation7 + $0xc] sm:$0xf]
    %v340 = vld [vmem:[#allocation7 + $0x10] sm:$0xf]
    %v341 = vld [vmem:[#allocation7 + $0x14] sm:$0xf]
    %v342 = vld [vmem:[#allocation7 + $0x18] sm:$0xf]
    %v343 = vld [vmem:[#allocation7 + $0x1c] sm:$0xf]
    %v344 = vld [vmem:[#allocation7 + $0x20] sm:$0xf]
    %v345 = vld [vmem:[#allocation7 + $0x24] sm:$0xf]
    %v346 = vld [vmem:[#allocation7 + $0x28] sm:$0xf]
    %v347 = vld [vmem:[#allocation7 + $0x2c] sm:$0xf]
    %v348 = vld [vmem:[#allocation7 + $0x30] sm:$0xf]
    %v349 = vld [vmem:[#allocation7 + $0x34] sm:$0xf]
    %v350 = vld [vmem:[#allocation7 + $0x38] sm:$0xf]
    %v351 = vld [vmem:[#allocation7 + $0x3c] sm:$0xf]
    %v352 = vld [vmem:[%s10] sm:$0x1]
    %v354 = vlaneseq
    %v355 = vshrl.u32 %v354, 7
    %v356 = vsub.s32 0, %v355
    %v357 = vrot.slane %v352, %v356
    %v375 = vunpack.c.l.b16 %v336
    %v376 = vunpack.c.l.b16 %v337
    %v377 = vunpack.c.l.b16 %v338
    %v378 = vunpack.c.l.b16 %v339
    %v379 = vunpack.c.l.b16 %v340
    %v380 = vunpack.c.l.b16 %v341
    %v381 = vunpack.c.l.b16 %v342
    %v382 = vunpack.c.l.b16 %v343
    %v383 = vunpack.c.l.b16 %v344
    %v384 = vunpack.c.l.b16 %v345
    %v385 = vunpack.c.l.b16 %v346
    %v386 = vunpack.c.l.b16 %v347
    %v387 = vunpack.c.l.b16 %v348
    %v388 = vunpack.c.l.b16 %v349
    %v389 = vunpack.c.l.b16 %v350
    %v390 = vunpack.c.l.b16 %v351
    %v391 = vpack.c.b16 %v376, %v375
    %v392 = vpack.c.b16 %v378, %v377
    %v393 = vpack.c.b16 %v380, %v379
    %v394 = vpack.c.b16 %v382, %v381
    %v395 = vpack.c.b16 %v384, %v383
    %v396 = vpack.c.b16 %v386, %v385
    %v397 = vpack.c.b16 %v388, %v387
    %v398 = vpack.c.b16 %v390, %v389
    %407 = vmatprep.subr.bf16.mxu0 0
    %408 = vmatpush1.bf16.msra.mxu0 %v398
    %409 = vmatprep.subr.bf16.mxu0 0
    %410 = vmatpush1.bf16.msra.mxu0 %v397
    %411 = vmatprep.subr.bf16.mxu0 0
    %412 = vmatpush1.bf16.msra.mxu0 %v396
    %413 = vmatprep.subr.bf16.mxu0 0
    %414 = vmatpush1.bf16.msra.mxu0 %v395
    %415 = vmatprep.subr.bf16.mxu0 0
    %416 = vmatpush1.bf16.msra.mxu0 %v394
    %417 = vmatprep.subr.bf16.mxu0 0
    %418 = vmatpush1.bf16.msra.mxu0 %v393
    %419 = vmatprep.subr.bf16.mxu0 0
    %420 = vmatpush1.bf16.msra.mxu0 %v392
    %421 = vmatprep.subr.bf16.mxu0 0
    %422 = vmatpush1.bf16.msra.mxu0 %v391
    %423 = vmatprep.subr.bf16.mxu0 0
    %424 = vmatpush2.bf16.msra.mxu0 0
    %425 = vmatprep.subr.bf16.mxu0 0
    %426 = vmatpush2.bf16.msra.mxu0 0
    %427 = vmatprep.subr.bf16.mxu0 0
    %428 = vmatpush2.bf16.msra.mxu0 0
    %429 = vmatprep.subr.bf16.mxu0 0
    %430 = vmatpush2.bf16.msra.mxu0 0
    %431 = vmatprep.subr.bf16.mxu0 0
    %432 = vmatpush2.bf16.msra.mxu0 0
    %433 = vmatprep.subr.bf16.mxu0 0
    %434 = vmatpush2.bf16.msra.mxu0 0
    %435 = vmatprep.subr.bf16.mxu0 0
    %436 = vmatpush2.bf16.msra.mxu0 0
    %437 = vmatprep.subr.bf16.mxu0 0
    %438 = vmatpush2.bf16.msra.mxu0 0
    %439 = vmatprep.mubr.bf16.mxu0 0
    %440 = vmatmul.mubr.bf16.gmra.mxu0 %v335
    %v441 = vpop.f32.mrf.mxu0
    %v442 = vadd.f32 %v357, %v441
    %v443 = vpop.f32.mrf.mxu0
    %v444 = vpop.f32.mrf.mxu0
    %v445 = vpop.f32.mrf.mxu0
    %446 = vdwg.mxu0
    %v447 = vtanh.pop %v442
    %v448 = vmul.f32 %v447, 3.1415927
    %vm449 = vcmp.ne.f32.partialorder %v448, %v448
    %v450 = vsel %vm449, 0.0, %v448
    %v451 = vpack.c.bf16 %v450, %v450
    %452 = vst [vmem:[%s11] sm:$0xf] %v451
    // Predicated region
    $region62: #{ppo_agent_forward.1} parent=1 // pred_check
      _
    $region63: #{ppo_agent_forward.1} parent=1 // pred_check_branch
      %454 = sbr.rel (0) target = $region65
    $region64: #{ppo_agent_forward.1} parent=1 // pred_region
      _
    $region65: #{ppo_agent_forward.1} parent=1 // pred_fallthru
      _
    // Predicated region
    $region66: #{ppo_agent_forward.1} parent=1 // pred_check
      _
    $region67: #{ppo_agent_forward.1} parent=1 // pred_check_branch
      %456 = sbr.rel (0) target = $region69
    $region68: #{ppo_agent_forward.1} parent=1 // pred_region
      _
    $region69: #{ppo_agent_forward.1} parent=1 // pred_fallthru
      _
    %457 = vsyncpa [#allocation3], 1
    %458 = vsyncpa [#allocation5], 1
    %459 = vsyncpa [#allocation8], 1

</llo_original>
